<compile_context>
chip_gen: v5e
topology: v5e:2x2
jax: 0.10.0
libtpu: 0.0.40
codegen_flags: <defaults>
</compile_context>

<pallas_src>
import math

import jax
import jax.numpy as jnp
from jax.experimental import pallas as pl
from jax.experimental.pallas import tpu as pltpu


# ----------------------------------------------------------------------------
# Hardware-aware configuration
# ----------------------------------------------------------------------------
_HW_CFG = None
_PIPELINE_MODE_OK = True     # flipped off if pl.Buffered / pipeline_mode is rejected


def _get_hw_cfg():
    global _HW_CFG
    if _HW_CFG is None:
        try:
            vmem = int(pltpu.get_tpu_info().vmem_capacity_bytes)
        except Exception:
            vmem = 64 << 20                      # conservative (v7x-class) fallback
        if vmem >= (96 << 20):                   # v5e / v6e: 128 MiB physical VMEM
            _HW_CFG = {"target": 12 << 20, "max_tile": 24 << 20,
                       "vmem_limit": 64 << 20, "x_buffers": None}
        else:                                    # v7x-class: 64 MiB VMEM, faster HBM
            _HW_CFG = {"target": 8 << 20, "max_tile": 12 << 20,
                       "vmem_limit": 44 << 20, "x_buffers": 3}
    return _HW_CFG


def _round_up(n, m):
    return ((n + m - 1) // m) * m


def _round_down(n, m):
    return (n // m) * m


def _padded_slab_bytes(C, D, dtype):
    """VMEM bytes of one (C, D) slab after lane/sublane padding."""
    itemsize = jnp.dtype(dtype).itemsize
    sublane = max(8, 32 // itemsize)             # 8 (f32), 16 (bf16), 32 (int8)
    return _round_up(C, sublane) * _round_up(D, 128) * itemsize


def _choose_batch_tile(B, row_bytes, target_bytes):
    """Pick a batch tile: byte-limited, but never a 1-step grid when B > 8."""
    tb = max(1, target_bytes // max(row_bytes, 1))
    if B <= 8:
        return B                                 # tiny batch: single full block
    # >= ~4 grid steps for B >= 32, >= 2 steps otherwise: keeps the Pallas
    # prefetch pipeline primed and lets both v7x TensorCores take work.
    cap = max(8, _round_down(B // 4, 8)) if B >= 32 else 8
    tb = min(tb, cap)
    tb = max(8, _round_down(tb, 8))              # (tb, C) out block needs tb % 8 == 0
    return min(tb, B)


def _spec(block_shape, index_map, buffers=None):
    if buffers is None:
        return pl.BlockSpec(block_shape, index_map)
    return pl.BlockSpec(block_shape, index_map, pipeline_mode=pl.Buffered(buffers))


def _cost_estimate(B, C, D, x_dtype, w_dtype, b_dtype, out_dtype):
    return pl.CostEstimate(
        flops=2 * B * C * D,
        transcendentals=0,
        bytes_accessed=int(B * C * D * jnp.dtype(x_dtype).itemsize
                           + C * D * jnp.dtype(w_dtype).itemsize
                           + B * C * jnp.dtype(out_dtype).itemsize
                           + C * jnp.dtype(b_dtype).itemsize),
    )


# ----------------------------------------------------------------------------
# Kernels
# ----------------------------------------------------------------------------
def _gwl_kernel(x_ref, w_ref, b_ref, o_ref):
    """Batch-tiled kernel: full C and D per block.

    x_ref: (TB, C, D)   w_ref: (1, C, D)   b_ref: (1, C)   o_ref: (TB, C)
    """
    prod = x_ref[...] * w_ref[...]                        # native-dtype VPU multiply
    red = jnp.sum(prod, axis=-1, dtype=jnp.float32)       # f32 accumulation (XLU)
    o_ref[...] = (red + b_ref[...].astype(jnp.float32)).astype(o_ref.dtype)


def _make_gwl_dsplit_kernel(td, w_resident):
    """Batch + reduction-axis tiled kernel (accumulator pattern).

    x_ref: (TB, C, td)
    w_ref: (1, C, D) if w_resident else (1, C, td)
    b_ref: (1, C)     o_ref: (TB, C)     acc_ref: (TB, C) f32 scratch
    """
    def kernel(x_ref, w_ref, b_ref, o_ref, acc_ref):
        k = pl.program_id(1)

        @pl.when(k == 0)
        def _():
            acc_ref[...] = jnp.zeros_like(acc_ref)

        if w_resident:
            start = pl.multiple_of(k * td, 128)
            w = w_ref[:, :, pl.ds(start, td)]             # slice resident W in VMEM
        else:
            w = w_ref[...]
        acc_ref[...] += jnp.sum(x_ref[...] * w, axis=-1, dtype=jnp.float32)

        @pl.when(k == pl.num_programs(1) - 1)
        def _():
            o_ref[...] = (acc_ref[...]
                          + b_ref[...].astype(jnp.float32)).astype(o_ref.dtype)

    return kernel


# ----------------------------------------------------------------------------
# pallas_call builders
# ----------------------------------------------------------------------------
def _run_full_d(x, W, b, out_dtype, tb, cfg, cost, use_pm):
    B, C, D = x.shape
    const_buf = 1 if use_pm else None
    x_buf = cfg["x_buffers"] if use_pm else None
    return pl.pallas_call(
        _gwl_kernel,
        out_shape=jax.ShapeDtypeStruct((B, C), out_dtype),
        grid=(pl.cdiv(B, tb),),
        in_specs=[
            _spec((tb, C, D), lambda i: (i, 0, 0), x_buf),
            _spec((1, C, D), lambda i: (0, 0, 0), const_buf),   # resident weight
            _spec((1, C), lambda i: (0, 0), const_buf),         # resident bias
        ],
        out_specs=pl.BlockSpec((tb, C), lambda i: (i, 0)),
        compiler_params=pltpu.CompilerParams(
            dimension_semantics=("parallel",),
            vmem_limit_bytes=cfg["vmem_limit"],
        ),
        cost_estimate=cost,
    )(x, W, b)


def _run_dsplit(x, W, b, out_dtype, tb, td, w_resident, cfg, cost, use_pm):
    B, C, D = x.shape
    const_buf = 1 if use_pm else None
    x_buf = cfg["x_buffers"] if use_pm else None
    if w_resident:
        w_spec = _spec((1, C, D), lambda i, k: (0, 0, 0), const_buf)   # W resident
    else:
        w_spec = _spec((1, C, td), lambda i, k: (0, 0, k))             # W streamed
    return pl.pallas_call(
        _make_gwl_dsplit_kernel(td, w_resident),
        out_shape=jax.ShapeDtypeStruct((B, C), out_dtype),
        grid=(pl.cdiv(B, tb), D // td),                    # reduction axis last
        in_specs=[
            _spec((tb, C, td), lambda i, k: (i, 0, k), x_buf),
            w_spec,
            _spec((1, C), lambda i, k: (0, 0), const_buf),             # resident bias
        ],
        out_specs=pl.BlockSpec((tb, C), lambda i, k: (i, 0)),
        scratch_shapes=[pltpu.VMEM((tb, C), jnp.float32)],
        compiler_params=pltpu.CompilerParams(
            dimension_semantics=("parallel", "arbitrary"),
            vmem_limit_bytes=cfg["vmem_limit"],
        ),
        cost_estimate=cost,
    )(x, W, b)


# ----------------------------------------------------------------------------
# Wrapper
# ----------------------------------------------------------------------------
def groupwise_linear(x, W, b, *, block_batch=None, block_d=None, w_resident=None):
    """x: (B, C, D), W: (1, C, D), b: (1, C)  ->  (B, C)."""
    global _PIPELINE_MODE_OK
    B, C, D = x.shape
    assert W.shape == (1, C, D) and b.shape == (1, C)
    cfg = _get_hw_cfg()
    out_dtype = jnp.result_type(x.dtype, W.dtype, b.dtype)

    x_row = _padded_slab_bytes(C, D, x.dtype)     # padded bytes of one (C, D) slab
    min_tb = B if B < 8 else 8

    # Decide whether the reduction axis D needs tiling as well.
    if block_d is None and x_row * min_tb > cfg["max_tile"] and D % 128 == 0:
        for cand in (4096, 2048, 1024, 512, 256, 128):
            if D % cand == 0 and _padded_slab_bytes(C, cand, x.dtype) * min_tb <= cfg["target"]:
                block_d = cand
                break
        if block_d is None:
            block_d = 128
    # TODO(synk): D % 128 != 0 with a huge (min_tb, C, D) slab still falls back to
    # the full-D path; a lane-dense (B, C*D) repack would fix both that and the
    # small-D lane under-utilisation.

    use_dsplit = (block_d is not None and block_d < D
                  and D % block_d == 0 and block_d % 128 == 0)

    row = _padded_slab_bytes(C, block_d, x.dtype) if use_dsplit else x_row
    if block_batch is not None:
        tb = max(1, min(int(block_batch), B))
        if tb < B:
            tb = min(max(8, (tb // 8) * 8), B)
    else:
        tb = _choose_batch_tile(B, row, cfg["target"])

    if use_dsplit and w_resident is None:
        w_bytes = _padded_slab_bytes(C, D, W.dtype)
        w_resident = 2 * w_bytes <= cfg["vmem_limit"] // 4

    cost = _cost_estimate(B, C, D, x.dtype, W.dtype, b.dtype, out_dtype)

    def run(use_pm):
        if use_dsplit:
            return _run_dsplit(x, W, b, out_dtype, tb, block_d, bool(w_resident),
                               cfg, cost, use_pm)
        return _run_full_d(x, W, b, out_dtype, tb, cfg, cost, use_pm)

    if _PIPELINE_MODE_OK:
        try:
            return run(True)
        except Exception:
            # pipeline_mode / pl.Buffered not supported by this Pallas build:
            # retry with default double-buffering everywhere.
            _PIPELINE_MODE_OK = False
    return run(False)


# ----------------------------------------------------------------------------
# Param init (matches GroupWiseLinear.reset_parameters: uniform(-stdv, stdv))
# ----------------------------------------------------------------------------
def init_params(key, num_class, hidden_dim):
    stdv = 1.0 / math.sqrt(hidden_dim)
    kw, kb = jax.random.split(key)
    W = jax.random.uniform(kw, (1, num_class, hidden_dim),
                           minval=-stdv, maxval=stdv, dtype=jnp.float32)
    b = jax.random.uniform(kb, (1, num_class),
                           minval=-stdv, maxval=stdv, dtype=jnp.float32)
    return W, b


def _ref(x, W, b):
    return jnp.sum(W * x, axis=-1) + b


if __name__ == "__main__":
    key = jax.random.PRNGKey(0)
    k_params, k_x, k_x2, k_x3, k_x4 = jax.random.split(key, 5)

    # --- small shape matching the module (batch=2, num_class=8, hidden=32) ---
    batch, num_class, hidden_dim = 2, 8, 32
    W, b = init_params(k_params, num_class, hidden_dim)
    x = jax.random.normal(k_x, (batch, num_class, hidden_dim), dtype=jnp.float32)

    out = jax.block_until_ready(groupwise_linear(x, W, b))
    assert out.shape == (batch, num_class)
    assert jnp.allclose(out, _ref(x, W, b), atol=1e-5, rtol=1e-5), \
        "mismatch vs reference (base)"

    # --- batch-tiled path (grid > 1, ragged last block) -----------------------
    x2 = jax.random.normal(k_x2, (20, num_class, hidden_dim), dtype=jnp.float32)
    out2 = jax.block_until_ready(groupwise_linear(x2, W, b, block_batch=8))
    assert jnp.allclose(out2, _ref(x2, W, b), atol=1e-5, rtol=1e-5), \
        "mismatch vs reference (batch-tiled)"

    # --- D-split accumulator path, resident W ---------------------------------
    D2 = 256
    W3, b3 = init_params(k_params, num_class, D2)
    x3 = jax.random.normal(k_x3, (16, num_class, D2), dtype=jnp.float32)
    out3 = jax.block_until_ready(
        groupwise_linear(x3, W3, b3, block_batch=8, block_d=128, w_resident=True))
    assert jnp.allclose(out3, _ref(x3, W3, b3), atol=1e-4, rtol=1e-5), \
        "mismatch vs reference (D-split, resident W)"

    # --- D-split accumulator path, streamed W ----------------------------------
    out3b = jax.block_until_ready(
        groupwise_linear(x3, W3, b3, block_batch=8, block_d=128, w_resident=False))
    assert jnp.allclose(out3b, _ref(x3, W3, b3), atol=1e-4, rtol=1e-5), \
        "mismatch vs reference (D-split, streamed W)"

    # --- bf16 input: native-dtype multiply + f32 accumulation -----------------
    xb = jax.random.normal(k_x4, (16, num_class, hidden_dim), dtype=jnp.float32)
    xb16 = xb.astype(jnp.bfloat16)
    Wb16, bb16 = W.astype(jnp.bfloat16), b.astype(jnp.bfloat16)
    out4 = jax.block_until_ready(groupwise_linear(xb16, Wb16, bb16, block_batch=16))
    ref4 = _ref(xb16.astype(jnp.float32), Wb16.astype(jnp.float32),
                bb16.astype(jnp.float32))
    assert jnp.allclose(out4.astype(jnp.float32), ref4, atol=5e-2, rtol=5e-2), \
        "mismatch vs reference (bf16)"

    print("KERNEL_OK")
</pallas_src>

<mosaic_0001>
module attributes {stable_mosaic.version = 11 : i64} {
  func.func @_gwl_kernel(%arg0: i32, %arg1: memref<2x8x32xf32, #tpu.memory_space<vmem>>, %arg2: memref<1x8x32xf32, #tpu.memory_space<vmem>>, %arg3: memref<1x8xf32, #tpu.memory_space<vmem>>, %arg4: memref<2x8xf32, #tpu.memory_space<vmem>>) attributes {dimension_semantics = [#tpu.dimension_semantics<parallel>], iteration_bounds = array<i64: 1>, scalar_prefetch = 0 : i64, scratch_operands = 0 : i64, tpu.core_type = #tpu.core_type<tc>, window_params = [{transform_indices = @transform_0, window_bounds = array<i64: 2, 8, 32>}, {pipeline_mode = #tpu.pipeline_mode<synchronous>, transform_indices = @transform_1, window_bounds = array<i64: 1, 8, 32>}, {pipeline_mode = #tpu.pipeline_mode<synchronous>, transform_indices = @transform_2, window_bounds = array<i64: 1, 8>}, {transform_indices = @transform_3, window_bounds = array<i64: 2, 8>}]} {
    %c0 = arith.constant 0 : index
    %c0_0 = arith.constant 0 : index
    %c0_1 = arith.constant 0 : index
    %0 = vector.load %arg1[%c0, %c0_0, %c0_1] : memref<2x8x32xf32, #tpu.memory_space<vmem>>, vector<2x8x32xf32>
    %c0_2 = arith.constant 0 : index
    %c0_3 = arith.constant 0 : index
    %c0_4 = arith.constant 0 : index
    %1 = vector.load %arg2[%c0_2, %c0_3, %c0_4] : memref<1x8x32xf32, #tpu.memory_space<vmem>>, vector<1x8x32xf32>
    %2 = vector.broadcast %1 : vector<1x8x32xf32> to vector<2x8x32xf32>
    %3 = arith.mulf %0, %2 : vector<2x8x32xf32>
    %cst = arith.constant dense<0.000000e+00> : vector<2x8xf32>
    %4 = vector.multi_reduction <add>, %3, %cst [2] : vector<2x8x32xf32> to vector<2x8xf32>
    %c0_5 = arith.constant 0 : index
    %c0_6 = arith.constant 0 : index
    %5 = vector.load %arg3[%c0_5, %c0_6] : memref<1x8xf32, #tpu.memory_space<vmem>>, vector<1x8xf32>
    %6 = vector.broadcast %5 : vector<1x8xf32> to vector<2x8xf32>
    %7 = arith.addf %4, %6 : vector<2x8xf32>
    %c0_7 = arith.constant 0 : index
    %c0_8 = arith.constant 0 : index
    %8 = vector.load %arg4[%c0_7, %c0_8] : memref<2x8xf32, #tpu.memory_space<vmem>>, vector<2x8xf32>
    tpu.vector_store %arg4[%c0_7, %c0_8], %7 {strides = array<i32>} : memref<2x8xf32, #tpu.memory_space<vmem>>, vector<2x8xf32>,
    return
  }
  func.func @transform_0(%arg0: i32) -> (i32, i32, i32) {
    %c0_i32 = arith.constant 0 : i32
    %c0_i32_0 = arith.constant 0 : i32
    %c0_i32_1 = arith.constant 0 : i32
    return %arg0, %c0_i32, %c0_i32_0 : i32, i32, i32
  }
  func.func @transform_1(%arg0: i32) -> (i32, i32, i32) {
    %c0_i32 = arith.constant 0 : i32
    %c0_i32_0 = arith.constant 0 : i32
    %c0_i32_1 = arith.constant 0 : i32
    %c0_i32_2 = arith.constant 0 : i32
    return %c0_i32, %c0_i32_0, %c0_i32_1 : i32, i32, i32
  }
  func.func @transform_2(%arg0: i32) -> (i32, i32) {
    %c0_i32 = arith.constant 0 : i32
    %c0_i32_0 = arith.constant 0 : i32
    %c0_i32_1 = arith.constant 0 : i32
    return %c0_i32, %c0_i32_0 : i32, i32
  }
  func.func @transform_3(%arg0: i32) -> (i32, i32) {
    %c0_i32 = arith.constant 0 : i32
    %c0_i32_0 = arith.constant 0 : i32
    return %arg0, %c0_i32 : i32, i32
  }
}

</mosaic_0001>

<llo_original>
// kernel: tpu_custom_call.1
$region0: #{tpu_custom_call.1}
  #allocation0 [shape = 'u32[]', space=smem, size = 0x4, offset = 0x4, fixed_abs, tag = 'smem constant byte address 0x4 - core index']
  #allocation1 [shape = 'u32[72,128]{1,0:T(1,128)}', space=vmem, size = 0x9000, scoped, tag = 'internal scratch']
  %s0 = inlined_call_operand.hbm [shape: f32[2,8,32], index: 0, kind: input, shape index: {}]
  %s1 = inlined_call_operand.hbm [shape: f32[1,8,32], index: 1, kind: input, shape index: {}]
  %s2 = inlined_call_operand.vmem [shape: f32[1,8], index: 2, kind: input, shape index: {}]
  %s3 = inlined_call_operand.hbm [shape: f32[2,8], index: 3, kind: output, shape index: {}]
  %s4 = sld [smem:[#allocation0]]
  $region30: #{tpu_custom_call.1} parent=0
    _
  %s6 = ssub.s32 1, %s4
  %s7 = scalar_select 0, %s6, %s4
  $region1: #{tpu_custom_call.1} parent=0
    #allocation2 [shape = 'u8[8192]{0}', space=vmem, size = 0x2000, scoped, tag = 'input window, operand 0, single buffered']
    #allocation3 [shape = 's32[1]{0}', space=sflag, size = 0x4, scoped, tag = 'scoped memory for tpu_custom_call.1']
    #allocation4 [shape = 's32[1]{0}', space=sflag, size = 0x4, scoped, tag = 'scoped memory for tpu_custom_call.1']
    #allocation5 [shape = 'u8[4096]{0}', space=vmem, size = 0x1000, scoped, tag = 'input window, operand 1, single buffered']
    #allocation6 [shape = 's32[1]{0}', space=sflag, size = 0x4, scoped, tag = 'scoped memory for tpu_custom_call.1']
    #allocation7 [shape = 'u8[1024]{0}', space=vmem, size = 0x400, scoped, tag = 'output window, operand 0, single buffered']
    %8 = vsyncpa [#allocation3], 0
    %9 = vsyncpa [#allocation6], 0
    %10 = vsyncpa [#allocation4], 0
    // Predicated region
    $region2: #{tpu_custom_call.1} parent=1 // pred_check
      _
    $region3: #{tpu_custom_call.1} parent=1 // pred_check_branch
      %12 = sbr.rel (0) target = $region5
    $region4: #{tpu_custom_call.1} parent=1 // pred_region
      %14 = vsyncadd [#allocation3], 0
      %s15 = sshll.u32 %s0, 4
      %s16 = int_to_ptr.hbm [resolvable:$true] %s15
      %s17 = sshll.u32 [#allocation2], 4
      %s18 = int_to_ptr.vmem [resolvable:$true] %s17
      %23 = dma.hbm_to_vmem [thread:$0]  %s16, 256, %s18, [#allocation3], 128, 128, 8
    $region5: #{tpu_custom_call.1} parent=1 // pred_fallthru
      _
    // Predicated region
    $region6: #{tpu_custom_call.1} parent=1 // pred_check
      _
    $region7: #{tpu_custom_call.1} parent=1 // pred_check_branch
      %25 = sbr.rel (0) target = $region9
    $region8: #{tpu_custom_call.1} parent=1 // pred_region
      %27 = vsyncadd [#allocation6], 0
      %s29 = sshll.u32 %s1, 4
      %s30 = int_to_ptr.hbm [resolvable:$true] %s29
      %s31 = sshll.u32 [#allocation5], 4
      %s32 = int_to_ptr.vmem [resolvable:$true] %s31
      %34 = dma.hbm_to_vmem [thread:$0]  %s30, 128, %s32, [#allocation6]
    $region9: #{tpu_custom_call.1} parent=1 // pred_fallthru
      _
    // Predicated region
    $region10: #{tpu_custom_call.1} parent=1 // pred_check
      _
    $region11: #{tpu_custom_call.1} parent=1 // pred_check_branch
      %36 = sbr.rel (0) target = $region13
    $region12: #{tpu_custom_call.1} parent=1 // pred_region
      _
    $region13: #{tpu_custom_call.1} parent=1 // pred_fallthru
      _
    // Predicated region
    $region14: #{tpu_custom_call.1} parent=1 // pred_check
      _
    $region15: #{tpu_custom_call.1} parent=1 // pred_check_branch
      %38 = sbr.rel (0) target = $region17
    $region16: #{tpu_custom_call.1} parent=1 // pred_region
      %40 = dma.done [#allocation3], 256
    $region17: #{tpu_custom_call.1} parent=1 // pred_fallthru
      _
    // Predicated region
    $region18: #{tpu_custom_call.1} parent=1 // pred_check
      _
    $region19: #{tpu_custom_call.1} parent=1 // pred_check_branch
      %42 = sbr.rel (0) target = $region21
    $region20: #{tpu_custom_call.1} parent=1 // pred_region
      %44 = dma.done [#allocation6], 128
    $region21: #{tpu_custom_call.1} parent=1 // pred_fallthru
      _
    %v45 = vld [vmem:[#allocation2] sm:$0xff]
    %v46 = vld [vmem:[#allocation2 + $0x8] sm:$0xff]
    %v47 = vld [vmem:[#allocation5] sm:$0xff]
    %v48 = vmul.f32 %v45, %v47
    %v49 = vmul.f32 %v46, %v47
    %vm50 = vcmask 261120
    %v51 = vsel %vm50, %v48, 0.0
    %52 = vadd.xlane.f32.xlu0 %v51
    %v53 = vpop.xlane.xlu0 %52
    %v54 = vsel %vm50, %v49, 0.0
    %55 = vadd.xlane.f32.xlu0 %v54
    %v56 = vpop.xlane.xlu0 %55
    %v57 = vld [vmem:[%s2] sm:$0x1]
    %v59 = vperm.slane %v57, 0
    %v60 = vlaneseq
    %v61 = vshrl.u32 %v60, 7
    %63 = vset.pattern.permute.xlu0 %v61
    %64 = vperm.xlu0 %63, %v59
    %v65 = vpop.permute.xlu0 %64
    %v67 = vadd.f32 %v53, %v65
    %v68 = vadd.f32 %v56, %v65
    %71 = vset.pattern.permute.xlu0 0
    %72 = vperm.xlu0 %71, %v67
    %v73 = vpop.permute.xlu0 %72
    %74 = vset.pattern.permute.xlu0 0
    %75 = vperm.xlu0 %74, %v68
    %v76 = vpop.permute.xlu0 %75
    %v77 = vlaneseq
    %v78 = vand.u32 %v77, 127
    %v79 = vperm.slane %v73, %v78
    %v80 = vperm.slane %v76, %v78
    %vm81 = vcmask 1041409
    %v82 = vsel %vm81, %v80, %v79
    %vm84 = vcmask 58368
    %85 = vst.msk [vmem:[#allocation7] sm:$0x3] %vm84, %v82
    // Predicated region
    $region22: #{tpu_custom_call.1} parent=1 // pred_check
      _
    $region23: #{tpu_custom_call.1} parent=1 // pred_check_branch
      %87 = sbr.rel (0) target = $region25
    $region24: #{tpu_custom_call.1} parent=1 // pred_region
      %89 = vsyncadd [#allocation4], 0
      %s91 = sshll.u32 [#allocation7], 4
      %s92 = int_to_ptr.vmem [resolvable:$true] %s91
      %s93 = sshll.u32 %s3, 4
      %s94 = int_to_ptr.hbm [resolvable:$true] %s93
      %96 = dma.vmem_to_hbm [thread:$0]  %s92, 32, %s94, [#allocation4]
    $region25: #{tpu_custom_call.1} parent=1 // pred_fallthru
      _
    // Predicated region
    $region26: #{tpu_custom_call.1} parent=1 // pred_check
      _
    $region27: #{tpu_custom_call.1} parent=1 // pred_check_branch
      %98 = sbr.rel (0) target = $region29
    $region28: #{tpu_custom_call.1} parent=1 // pred_region
      %100 = dma.done [#allocation4], 32
    $region29: #{tpu_custom_call.1} parent=1 // pred_fallthru
      _
    %101 = vsyncpa [#allocation3], 1
    %102 = vsyncpa [#allocation6], 1
    %103 = vsyncpa [#allocation4], 1

</llo_original>
